<compile_context>
chip_gen: v6e
topology: v6e:2x2x1
jax: 0.10.0
libtpu: 0.0.40
codegen_flags: <defaults>
</compile_context>

<pallas_src>
import jax
import jax.numpy as jnp
from jax.experimental import pallas as pl
from jax.experimental.pallas import tpu as pltpu


def _copy_kernel(x_ref, o_ref):
    # Pure pass-through: copy the current VMEM tile into the output tile.
    o_ref[...] = x_ref[...]


_LANE_WIDTH = 1024               # 8 * 128 lanes -> lane-dense, unmasked stores
_TARGET_BLOCK_BYTES = 4 * 1024 * 1024   # ~4 MiB per input block per grid step


def _materialized_identity(x: jax.Array) -> jax.Array:
    """Run the identity through a Pallas copy kernel (materializes a new array)."""
    orig_shape = x.shape
    dtype = x.dtype
    itemsize = jnp.dtype(dtype).itemsize

    flat = x.reshape(-1)
    n = flat.shape[0]

    # Sublane packing: 8 rows for 32-bit, 16 for 16-bit, 32 for 8-bit dtypes.
    pack = max(1, 4 // max(1, itemsize))
    sub = 8 * pack

    # Rows of the lane-dense slab (last dim = _LANE_WIDTH), rounded to sublane pack.
    rows = pl.cdiv(n, _LANE_WIDTH)
    rows_aligned = pl.cdiv(rows, sub) * sub

    # Row tile targeting ~_TARGET_BLOCK_BYTES per block, multiple of `sub`,
    # but never larger than the (aligned) array itself.
    target_rows = max(sub, (_TARGET_BLOCK_BYTES // (_LANE_WIDTH * itemsize)) // sub * sub)
    row_tile = min(target_rows, rows_aligned)

    # Pad rows up so the grid divides evenly (keeps the tile shape static).
    rows_padded = pl.cdiv(rows_aligned, row_tile) * row_tile
    total = rows_padded * _LANE_WIDTH
    if total != n:
        flat = jnp.pad(flat, (0, total - n))
    slab = flat.reshape(rows_padded, _LANE_WIDTH)

    grid = (rows_padded // row_tile,)

    out = pl.pallas_call(
        _copy_kernel,
        out_shape=jax.ShapeDtypeStruct((rows_padded, _LANE_WIDTH), dtype),
        grid=grid,
        in_specs=[pl.BlockSpec((row_tile, _LANE_WIDTH), lambda i: (i, 0))],
        out_specs=pl.BlockSpec((row_tile, _LANE_WIDTH), lambda i: (i, 0)),
        compiler_params=pltpu.CompilerParams(
            # 2 bufs x (in tile + out tile) ~= 16 MiB in flight -> fits
            # v5e/v6e/v7x; raise the scoped limit so v5e's 16 MiB default
            # is not the gate.
            vmem_limit_bytes=32 * 1024 * 1024,
            dimension_semantics=("parallel",),  # shards rows across v7x's 2 TCs
        ),
    )(slab)

    return out.reshape(-1)[:n].reshape(orig_shape)


def no_embedding_forward(x: jax.Array, *, materialize: bool = False) -> jax.Array:
    """Identity forward of NoEmbedding.

    By default this is a true zero-cost pass-through (returns x, no HBM
    traffic).  Set materialize=True to force the data through the Pallas
    copy kernel (e.g. when a fresh buffer is genuinely required).
    """
    if not materialize:
        return x
    return _materialized_identity(x)


if __name__ == "__main__":
    key = jax.random.PRNGKey(0)
    batch, in_features = 8, 32  # small tabular-style shapes
    x = jax.random.normal(key, (batch, in_features), dtype=jnp.float32)

    # NoEmbedding has no parameters (num_out_feats == n_feats); nothing to init.

    # Default path: zero-cost identity (the recommended production path).
    y_fast = no_embedding_forward(x)
    assert y_fast.shape == x.shape and y_fast.dtype == x.dtype

    # Kernel path: materialized pass-through via the Pallas copy kernel.
    y = no_embedding_forward(x, materialize=True)
    y = jax.block_until_ready(y)

    assert y.shape == x.shape and y.dtype == x.dtype
    assert bool(jnp.array_equal(y, x))
    assert bool(jnp.array_equal(y_fast, x))
    print("KERNEL_OK")
</pallas_src>

<mosaic_0001>
module attributes {stable_mosaic.version = 11 : i64} {
  func.func @_copy_kernel(%arg0: i32, %arg1: memref<8x1024xf32, #tpu.memory_space<vmem>>, %arg2: memref<8x1024xf32, #tpu.memory_space<vmem>>) attributes {dimension_semantics = [#tpu.dimension_semantics<parallel>], iteration_bounds = array<i64: 1>, scalar_prefetch = 0 : i64, scratch_operands = 0 : i64, tpu.core_type = #tpu.core_type<tc>, window_params = [{transform_indices = @transform_0, window_bounds = array<i64: 8, 1024>}, {transform_indices = @transform_1, window_bounds = array<i64: 8, 1024>}]} {
    %c0 = arith.constant 0 : index
    %c0_0 = arith.constant 0 : index
    %0 = vector.load %arg1[%c0, %c0_0] : memref<8x1024xf32, #tpu.memory_space<vmem>>, vector<8x1024xf32>
    %c0_1 = arith.constant 0 : index
    %c0_2 = arith.constant 0 : index
    %1 = vector.load %arg2[%c0_1, %c0_2] : memref<8x1024xf32, #tpu.memory_space<vmem>>, vector<8x1024xf32>
    tpu.vector_store %arg2[%c0_1, %c0_2], %0 {strides = array<i32>} : memref<8x1024xf32, #tpu.memory_space<vmem>>, vector<8x1024xf32>,
    return
  }
  func.func @transform_0(%arg0: i32) -> (i32, i32) {
    %c0_i32 = arith.constant 0 : i32
    %c0_i32_0 = arith.constant 0 : i32
    return %arg0, %c0_i32 : i32, i32
  }
  func.func @transform_1(%arg0: i32) -> (i32, i32) {
    %c0_i32 = arith.constant 0 : i32
    %c0_i32_0 = arith.constant 0 : i32
    return %arg0, %c0_i32 : i32, i32
  }
}

</mosaic_0001>

<llo_original>
// kernel: tpu_custom_call.1
$region0: #{tpu_custom_call.1}
  #allocation0 [shape = 'u32[]', space=smem, size = 0x4, offset = 0x4, fixed_abs, tag = 'smem constant byte address 0x4 - core index']
  #allocation1 [shape = 'u32[144,128]{1,0:T(1,128)}', space=vmem, size = 0x12000, scoped, tag = 'internal scratch']
  %s0 = inlined_call_operand.hbm [shape: f32[8,1024], index: 0, kind: input, shape index: {}]
  %s1 = inlined_call_operand.hbm [shape: f32[8,1024], index: 1, kind: output, shape index: {}]
  %s2 = sld [smem:[#allocation0]]
  $region18: #{tpu_custom_call.1} parent=0
    _
  %s4 = ssub.s32 1, %s2
  %s5 = scalar_select 0, %s4, %s2
  $region1: #{tpu_custom_call.1} parent=0
    #allocation2 [shape = 'u8[32768]{0}', space=vmem, size = 0x8000, scoped, tag = 'input window, operand 0, single buffered']
    #allocation3 [shape = 's32[1]{0}', space=sflag, size = 0x4, scoped, tag = 'scoped memory for tpu_custom_call.1']
    #allocation4 [shape = 's32[1]{0}', space=sflag, size = 0x4, scoped, tag = 'scoped memory for tpu_custom_call.1']
    #allocation5 [shape = 'u8[32768]{0}', space=vmem, size = 0x8000, scoped, tag = 'output window, operand 0, single buffered']
    %6 = vsyncpa [#allocation3], 0
    %7 = vsyncpa [#allocation4], 0
    // Predicated region
    $region2: #{tpu_custom_call.1} parent=1 // pred_check
      _
    $region3: #{tpu_custom_call.1} parent=1 // pred_check_branch
      %9 = sbr.rel (0) target = $region5
    $region4: #{tpu_custom_call.1} parent=1 // pred_region
      %s11 = ssub.s32 1024, 1024
      %12 = vsyncadd [#allocation3], %s11
      %s14 = sshll.u32 [#allocation2], 4
      %s15 = int_to_ptr.vmem [resolvable:$true] %s14
      %17 = dma.hbm_to_vmem [thread:$0]  %s0, 1024, %s15, [#allocation3]
    $region5: #{tpu_custom_call.1} parent=1 // pred_fallthru
      _
    // Predicated region
    $region6: #{tpu_custom_call.1} parent=1 // pred_check
      _
    $region7: #{tpu_custom_call.1} parent=1 // pred_check_branch
      %19 = sbr.rel (0) target = $region9
    $region8: #{tpu_custom_call.1} parent=1 // pred_region
      %20 = dma.done [#allocation3], 1024
    $region9: #{tpu_custom_call.1} parent=1 // pred_fallthru
      _
    %v21 = vld [vmem:[#allocation2] sm:$0xff]
    %v22 = vld [vmem:[#allocation2 + $0x8] sm:$0xff]
    %v23 = vld [vmem:[#allocation2 + $0x10] sm:$0xff]
    %v24 = vld [vmem:[#allocation2 + $0x18] sm:$0xff]
    %v25 = vld [vmem:[#allocation2 + $0x20] sm:$0xff]
    %v26 = vld [vmem:[#allocation2 + $0x28] sm:$0xff]
    %v27 = vld [vmem:[#allocation2 + $0x30] sm:$0xff]
    %v28 = vld [vmem:[#allocation2 + $0x38] sm:$0xff]
    %29 = vst [vmem:[#allocation5] sm:$0xff] %v21
    %30 = vst [vmem:[#allocation5 + $0x8] sm:$0xff] %v22
    %31 = vst [vmem:[#allocation5 + $0x10] sm:$0xff] %v23
    %32 = vst [vmem:[#allocation5 + $0x18] sm:$0xff] %v24
    %33 = vst [vmem:[#allocation5 + $0x20] sm:$0xff] %v25
    %34 = vst [vmem:[#allocation5 + $0x28] sm:$0xff] %v26
    %35 = vst [vmem:[#allocation5 + $0x30] sm:$0xff] %v27
    %36 = vst [vmem:[#allocation5 + $0x38] sm:$0xff] %v28
    // Predicated region
    $region10: #{tpu_custom_call.1} parent=1 // pred_check
      _
    $region11: #{tpu_custom_call.1} parent=1 // pred_check_branch
      %38 = sbr.rel (0) target = $region13
    $region12: #{tpu_custom_call.1} parent=1 // pred_region
      %s40 = ssub.s32 1024, 1024
      %41 = vsyncadd [#allocation4], %s40
      %s43 = sshll.u32 [#allocation5], 4
      %s44 = int_to_ptr.vmem [resolvable:$true] %s43
      %46 = dma.vmem_to_hbm [thread:$0]  %s44, 1024, %s1, [#allocation4]
    $region13: #{tpu_custom_call.1} parent=1 // pred_fallthru
      _
    // Predicated region
    $region14: #{tpu_custom_call.1} parent=1 // pred_check
      _
    $region15: #{tpu_custom_call.1} parent=1 // pred_check_branch
      %48 = sbr.rel (0) target = $region17
    $region16: #{tpu_custom_call.1} parent=1 // pred_region
      %49 = dma.done [#allocation4], 1024
    $region17: #{tpu_custom_call.1} parent=1 // pred_fallthru
      _
    %50 = vsyncpa [#allocation3], 1
    %51 = vsyncpa [#allocation4], 1

</llo_original>
